<compile_context>
chip_gen: v7x
topology: tpu7x:2x2x1
jax: 0.10.0
libtpu: 0.0.40
codegen_flags: <defaults>
</compile_context>

<pallas_src>
import jax
import jax.numpy as jnp
from jax.experimental import pallas as pl
from jax.experimental.pallas import tpu as pltpu


def _round_up(a: int, b: int) -> int:
    return (a + b - 1) // b * b


def _cdiv(a: int, b: int) -> int:
    return -(-a // b)


def _detect_tpu():
    """Best-effort (is_v7, is_v6, per-core VMEM bytes) with safe fallbacks."""
    kind = ""
    try:
        kind = jax.devices()[0].device_kind.lower()
    except Exception:
        pass
    is_v7 = "v7" in kind
    is_v6 = "v6" in kind
    vmem = 0
    try:
        vmem = int(pltpu.get_tpu_info().vmem_capacity_bytes)
    except Exception:
        vmem = 0
    if vmem <= 0:
        vmem = (64 << 20) if is_v7 else (128 << 20)
    if is_v7:
        vmem = min(vmem, 64 << 20)  # per-TensorCore VMEM on v7x
    return is_v7, is_v6, vmem


def _choose_hidden_tiling(d_h: int, th_req: int):
    """Lane-aligned hidden tile + (possibly padded) hidden size.

    Never falls back to "whole hidden dim as one block": if no 128-multiple
    near the request divides the (lane-padded) hidden dim, the hidden dim is
    padded up to a multiple of the tile; the zero-padded units contribute
    nothing to the output.
    """
    d_h_pad = _round_up(d_h, 128)
    th = min(_round_up(th_req, 128), d_h_pad)
    cand = th
    while cand >= max(128, th // 2):
        if d_h_pad % cand == 0:
            return cand, d_h_pad
        cand -= 128
    return th, _round_up(d_h_pad, th)


def swiglu_kernel(x_ref, wgu_ref, bgu_ref, wd_ref, bd_ref, o_ref, acc_ref):
    h = pl.program_id(1)

    @pl.when(h == 0)
    def _init():
        acc_ref[...] = jnp.zeros_like(acc_ref)

    x = x_ref[...]                                           # (tm, D_in)
    # One MXU matmul yields gate|up for this hidden slice (f32 accumulation).
    gu = jnp.dot(x, wgu_ref[...],
                 preferred_element_type=jnp.float32) + bgu_ref[...]
    th = gu.shape[-1] // 2                                   # static, mult of 128
    gate = gu[:, :th]
    up = gu[:, th:]
    # SiLU(gate) * up   (VPU elementwise; sigmoid's exp goes to the EUP).
    act = (gate * jax.nn.sigmoid(gate)) * up                 # (tm, th) f32
    # Partial down-projection accumulated in the resident f32 scratch.
    acc_ref[...] += jnp.dot(act.astype(wd_ref.dtype), wd_ref[...],
                            preferred_element_type=jnp.float32)

    @pl.when(h == pl.num_programs(1) - 1)
    def _finalize():
        o_ref[...] = (acc_ref[...] + bd_ref[...]).astype(o_ref.dtype)


def swiglu(x, wg, bg, wu, bu, wd, bd, *, tm=None, th=None,
           vmem_limit_bytes=None):
    """x: (N, D_in). wg/wu: (D_in, D_h), wd: (D_h, D_out). Biases (1, D) or (D,)."""
    N, D_in = x.shape
    D_h = wg.shape[1]
    D_out = wd.shape[1]
    bg = bg.reshape(1, -1)
    bu = bu.reshape(1, -1)
    bd = bd.reshape(1, -1)

    is_v7, is_v6, phys_vmem = _detect_tpu()

    # ---- tile selection ------------------------------------------------------
    # Row tile large enough that the Wg/Wu/Wd stream is reused over many tokens
    # (amortizes the per-m-tile weight DMA; at large N this is what makes the
    # kernel MXU-bound instead of HBM-weight-bound).
    if tm is None:
        tm = 512
    if th is None:
        th = 1024 if is_v6 else 512   # v6e: fewer h steps, fits 128 MiB VMEM

    N_pad8 = _round_up(max(N, 8), 8)
    tm = max(8, min(_round_up(tm, 8), N_pad8))
    num_m = _cdiv(N_pad8, tm)
    if is_v7 and N_pad8 > 8 and num_m < 2:
        # Feed both v7x TensorCores: at least two row tiles on the parallel axis.
        tm = _round_up(_cdiv(N_pad8, 2), 8)
        num_m = _cdiv(N_pad8, tm)
    N_pad = _round_up(N_pad8, tm)
    grid_m = N_pad // tm

    th, D_h_pad = _choose_hidden_tiling(D_h, th)
    grid_h = D_h_pad // th

    # ---- operand padding / packing -------------------------------------------
    if N_pad != N:
        x = jnp.pad(x, ((0, N_pad - N), (0, 0)))
    if D_h_pad != D_h:
        pad_h = D_h_pad - D_h
        wg = jnp.pad(wg, ((0, 0), (0, pad_h)))
        wu = jnp.pad(wu, ((0, 0), (0, pad_h)))
        bg = jnp.pad(bg, ((0, 0), (0, pad_h)))
        bu = jnp.pad(bu, ((0, 0), (0, pad_h)))
        wd = jnp.pad(wd, ((0, pad_h), (0, 0)))

    # Interleave Wg/Wu per hidden tile: block h of wgu is [Wg_tile_h | Wu_tile_h],
    # so one matmul per h step produces gate|up, split by static lane slices.
    wgu = jnp.concatenate(
        [wg.reshape(D_in, grid_h, th), wu.reshape(D_in, grid_h, th)], axis=2
    ).reshape(D_in, 2 * D_h_pad)
    bgu = jnp.concatenate(
        [bg.reshape(1, grid_h, th), bu.reshape(1, grid_h, th)], axis=2
    ).reshape(1, 2 * D_h_pad)

    # ---- VMEM budget (real working set, per-generation physical cap) ---------
    isz = lambda a: jnp.dtype(a.dtype).itemsize
    hbufs = 1 if is_v7 else 2          # h-invariant streams single-buffered on v7x
    working = (
        hbufs * tm * D_in * isz(x)                # x row tile
        + 2 * D_in * (2 * th) * isz(wgu)          # packed gate|up weight slice
        + 2 * (2 * th) * isz(bgu)                 # packed bias slice
        + 2 * th * D_out * isz(wd)                # down-proj weight slice
        + hbufs * D_out * isz(bd)                 # down-proj bias
        + hbufs * tm * D_out * isz(x)             # output tile
        + tm * D_out * 4                          # f32 accumulator scratch
        + 14 * tm * th                            # gu/act f32 + bf16 intermediates
    )
    if vmem_limit_bytes is None:
        vmem_limit_bytes = min(max(int(working * 1.25), 32 << 20),
                               int(phys_vmem * 0.9))

    # ---- cost estimate --------------------------------------------------------
    flops = 4 * N_pad * D_in * D_h_pad + 2 * N_pad * D_h_pad * D_out
    bytes_accessed = (
        N_pad * D_in * isz(x) + N_pad * D_out * isz(x)
        + grid_m * (2 * D_in * D_h_pad + D_h_pad * D_out) * isz(wgu)
        + 2 * D_h_pad * isz(bgu) + D_out * isz(bd))
    cost = pl.CostEstimate(flops=flops, transcendentals=N_pad * D_h_pad,
                           bytes_accessed=bytes_accessed)

    # ---- specs ----------------------------------------------------------------
    # On v7x, single-buffer the streams whose block index is constant across h
    # (x, bd, out): their only exposed DMA is once per m-tile, and the saved
    # VMEM is what lets tm=512/th=512 fit the 64 MiB per-core budget.
    buf1 = dict(pipeline_mode=pl.Buffered(1)) if is_v7 else {}
    in_specs = [
        pl.BlockSpec((tm, D_in), lambda m, h: (m, 0), **buf1),     # x row tile
        pl.BlockSpec((D_in, 2 * th), lambda m, h: (0, h)),         # Wg|Wu slice
        pl.BlockSpec((1, 2 * th), lambda m, h: (0, h)),            # bg|bu slice
        pl.BlockSpec((th, D_out), lambda m, h: (h, 0)),            # Wd slice
        pl.BlockSpec((1, D_out), lambda m, h: (0, 0), **buf1),     # bd (resident)
    ]
    out_spec = pl.BlockSpec((tm, D_out), lambda m, h: (m, 0), **buf1)

    out = pl.pallas_call(
        swiglu_kernel,
        out_shape=jax.ShapeDtypeStruct((N_pad, D_out), x.dtype),
        grid_spec=pltpu.PrefetchScalarGridSpec(
            num_scalar_prefetch=0,
            grid=(grid_m, grid_h),
            in_specs=in_specs,
            out_specs=out_spec,
            scratch_shapes=[pltpu.VMEM((tm, D_out), jnp.float32)],
        ),
        compiler_params=pltpu.CompilerParams(
            dimension_semantics=("parallel", "arbitrary"),
            vmem_limit_bytes=vmem_limit_bytes,
        ),
        cost_estimate=cost,
    )(x, wgu, bgu, wd, bd)

    return out[:N] if N_pad != N else out


if __name__ == "__main__":
    # Small, lane-aligned shapes consistent with the module.
    batch, seq = 2, 8
    in_features, hidden_features, out_features = 128, 256, 128

    key = jax.random.PRNGKey(0)
    kx, kg, kbg, ku, kbu, kd, kbd = jax.random.split(key, 7)

    x = jax.random.normal(kx, (batch, seq, in_features), jnp.float32)
    wg = jax.random.normal(kg, (in_features, hidden_features), jnp.float32) * 0.05
    bg = jax.random.normal(kbg, (1, hidden_features), jnp.float32) * 0.01
    wu = jax.random.normal(ku, (in_features, hidden_features), jnp.float32) * 0.05
    bu = jax.random.normal(kbu, (1, hidden_features), jnp.float32) * 0.01
    wd = jax.random.normal(kd, (hidden_features, out_features), jnp.float32) * 0.05
    bd = jax.random.normal(kbd, (1, out_features), jnp.float32) * 0.01

    # bf16 weights/activations; f32 accumulation happens inside the kernel.
    bf16 = jnp.bfloat16
    x_bf = x.astype(bf16)
    params_bf = [p.astype(bf16) for p in (wg, bg, wu, bu, wd, bd)]

    x2d = x_bf.reshape(batch * seq, in_features)
    out = swiglu(x2d, *params_bf)
    out = out.reshape(batch, seq, out_features)
    jax.block_until_ready(out)

    # Pure-JAX f32 reference built from the same bf16-quantized params.
    xf, wgf, bgf, wuf, buf_, wdf, bdf = (
        a.astype(jnp.float32) for a in (x_bf, *params_bf))
    gate = xf @ wgf + bgf[0]
    up = xf @ wuf + buf_[0]
    ref = ((jax.nn.silu(gate) * up) @ wdf + bdf[0]).reshape(
        batch, seq, out_features)

    assert jnp.allclose(out.astype(jnp.float32), ref, atol=2e-2, rtol=2e-2), \
        "mismatch vs reference"
    print("KERNEL_OK")
</pallas_src>

<mosaic_0001>
module attributes {stable_mosaic.version = 11 : i64} {
  func.func @swiglu_kernel(%arg0: i32, %arg1: i32, %arg2: memref<16x128xbf16, #tpu.memory_space<vmem>>, %arg3: memref<128x512xbf16, #tpu.memory_space<vmem>>, %arg4: memref<1x512xbf16, #tpu.memory_space<vmem>>, %arg5: memref<256x128xbf16, #tpu.memory_space<vmem>>, %arg6: memref<1x128xbf16, #tpu.memory_space<vmem>>, %arg7: memref<16x128xbf16, #tpu.memory_space<vmem>>, %arg8: memref<16x128xf32, #tpu.memory_space<vmem>>) attributes {dimension_semantics = [#tpu.dimension_semantics<parallel>, #tpu.dimension_semantics<arbitrary>], iteration_bounds = array<i64: 1, 1>, scalar_prefetch = 0 : i64, scratch_operands = 1 : i64, tpu.core_type = #tpu.core_type<tc>, window_params = [{transform_indices = @transform_0, window_bounds = array<i64: 16, 128>}, {transform_indices = @transform_1, window_bounds = array<i64: 128, 512>}, {transform_indices = @transform_2, window_bounds = array<i64: 1, 512>}, {transform_indices = @transform_3, window_bounds = array<i64: 256, 128>}, {pipeline_mode = #tpu.pipeline_mode<synchronous>, transform_indices = @transform_4, window_bounds = array<i64: 1, 128>}, {transform_indices = @transform_5, window_bounds = array<i64: 16, 128>}]} {
    %c0_i32 = arith.constant 0 : i32
    %0 = arith.cmpi eq, %arg1, %c0_i32 : i32
    %1 = arith.extui %0 : i1 to i32
    %c0_i32_0 = arith.constant 0 : i32
    %2 = arith.cmpi ne, %1, %c0_i32_0 : i32
    scf.if %2 {
      %cst_16 = arith.constant 0.000000e+00 : f32
      %28 = vector.broadcast %cst_16 : f32 to vector<16x128xf32>
      %c0_17 = arith.constant 0 : index
      %c0_18 = arith.constant 0 : index
      %29 = vector.load %arg8[%c0_17, %c0_18] : memref<16x128xf32, #tpu.memory_space<vmem>>, vector<16x128xf32>
      tpu.vector_store %arg8[%c0_17, %c0_18], %28 {strides = array<i32>} : memref<16x128xf32, #tpu.memory_space<vmem>>, vector<16x128xf32>,
    } else {
    }
    %c0 = arith.constant 0 : index
    %c0_1 = arith.constant 0 : index
    %3 = vector.load %arg2[%c0, %c0_1] : memref<16x128xbf16, #tpu.memory_space<vmem>>, vector<16x128xbf16>
    %c0_2 = arith.constant 0 : index
    %c0_3 = arith.constant 0 : index
    %4 = vector.load %arg3[%c0_2, %c0_3] : memref<128x512xbf16, #tpu.memory_space<vmem>>, vector<128x512xbf16>
    %cst = arith.constant dense<0.000000e+00> : vector<16x512xf32>
    %5 = tpu.matmul %3, %4, %cst {dimension_numbers = #tpu.dot_dimension_numbers<[1], [0], [0], [1], [0, 0, 1, 1], [], []>} : vector<16x128xbf16>, vector<128x512xbf16>, vector<16x512xf32> -> vector<16x512xf32>
    %c0_4 = arith.constant 0 : index
    %c0_5 = arith.constant 0 : index
    %6 = vector.load %arg4[%c0_4, %c0_5] : memref<1x512xbf16, #tpu.memory_space<vmem>>, vector<1x512xbf16>
    %7 = arith.extf %6 : vector<1x512xbf16> to vector<1x512xf32>
    %8 = vector.broadcast %7 : vector<1x512xf32> to vector<16x512xf32>
    %9 = arith.addf %5, %8 : vector<16x512xf32>
    %10 = vector.extract_strided_slice %9 {offsets = [0, 0], sizes = [16, 256], strides = [1, 1]} : vector<16x512xf32> to vector<16x256xf32>
    %11 = vector.extract_strided_slice %9 {offsets = [0, 256], sizes = [16, 256], strides = [1, 1]} : vector<16x512xf32> to vector<16x256xf32>
    %12 = arith.negf %10 : vector<16x256xf32>
    %13 = math.exp %12 : vector<16x256xf32>
    %cst_6 = arith.constant 1.000000e+00 : f32
    %14 = vector.broadcast %cst_6 : f32 to vector<16x256xf32>
    %15 = arith.addf %14, %13 : vector<16x256xf32>
    %16 = arith.divf %14, %15 : vector<16x256xf32>
    %17 = arith.mulf %10, %16 : vector<16x256xf32>
    %18 = arith.mulf %17, %11 : vector<16x256xf32>
    %c0_7 = arith.constant 0 : index
    %c0_8 = arith.constant 0 : index
    %19 = vector.load %arg8[%c0_7, %c0_8] : memref<16x128xf32, #tpu.memory_space<vmem>>, vector<16x128xf32>
    %20 = arith.truncf %18 : vector<16x256xf32> to vector<16x256xbf16>
    %c0_9 = arith.constant 0 : index
    %c0_10 = arith.constant 0 : index
    %21 = vector.load %arg5[%c0_9, %c0_10] : memref<256x128xbf16, #tpu.memory_space<vmem>>, vector<256x128xbf16>
    %cst_11 = arith.constant dense<0.000000e+00> : vector<16x128xf32>
    %22 = tpu.matmul %20, %21, %cst_11 {dimension_numbers = #tpu.dot_dimension_numbers<[1], [0], [0], [1], [0, 0, 1, 1], [], []>} : vector<16x256xbf16>, vector<256x128xbf16>, vector<16x128xf32> -> vector<16x128xf32>
    %23 = arith.addf %19, %22 : vector<16x128xf32>
    %c0_12 = arith.constant 0 : index
    %c0_13 = arith.constant 0 : index
    %24 = vector.load %arg8[%c0_12, %c0_13] : memref<16x128xf32, #tpu.memory_space<vmem>>, vector<16x128xf32>
    tpu.vector_store %arg8[%c0_12, %c0_13], %23 {strides = array<i32>} : memref<16x128xf32, #tpu.memory_space<vmem>>, vector<16x128xf32>,
    %c0_i32_14 = arith.constant 0 : i32
    %25 = arith.cmpi eq, %arg1, %c0_i32_14 : i32
    %26 = arith.extui %25 : i1 to i32
    %c0_i32_15 = arith.constant 0 : i32
    %27 = arith.cmpi ne, %26, %c0_i32_15 : i32
    scf.if %27 {
      %c0_16 = arith.constant 0 : index
      %c0_17 = arith.constant 0 : index
      %28 = vector.load %arg8[%c0_16, %c0_17] : memref<16x128xf32, #tpu.memory_space<vmem>>, vector<16x128xf32>
      %c0_18 = arith.constant 0 : index
      %c0_19 = arith.constant 0 : index
      %29 = vector.load %arg6[%c0_18, %c0_19] : memref<1x128xbf16, #tpu.memory_space<vmem>>, vector<1x128xbf16>
      %30 = arith.extf %29 : vector<1x128xbf16> to vector<1x128xf32>
      %31 = vector.broadcast %30 : vector<1x128xf32> to vector<16x128xf32>
      %32 = arith.addf %28, %31 : vector<16x128xf32>
      %33 = arith.truncf %32 : vector<16x128xf32> to vector<16x128xbf16>
      %c0_20 = arith.constant 0 : index
      %c0_21 = arith.constant 0 : index
      %34 = vector.load %arg7[%c0_20, %c0_21] : memref<16x128xbf16, #tpu.memory_space<vmem>>, vector<16x128xbf16>
      tpu.vector_store %arg7[%c0_20, %c0_21], %33 {strides = array<i32>} : memref<16x128xbf16, #tpu.memory_space<vmem>>, vector<16x128xbf16>,
    } else {
    }
    return
  }
  func.func @transform_0(%arg0: i32, %arg1: i32) -> (i32, i32) {
    %c0_i32 = arith.constant 0 : i32
    %c0_i32_0 = arith.constant 0 : i32
    return %arg0, %c0_i32 : i32, i32
  }
  func.func @transform_1(%arg0: i32, %arg1: i32) -> (i32, i32) {
    %c0_i32 = arith.constant 0 : i32
    %c0_i32_0 = arith.constant 0 : i32
    return %c0_i32, %arg1 : i32, i32
  }
  func.func @transform_2(%arg0: i32, %arg1: i32) -> (i32, i32) {
    %c0_i32 = arith.constant 0 : i32
    %c0_i32_0 = arith.constant 0 : i32
    return %c0_i32, %arg1 : i32, i32
  }
  func.func @transform_3(%arg0: i32, %arg1: i32) -> (i32, i32) {
    %c0_i32 = arith.constant 0 : i32
    %c0_i32_0 = arith.constant 0 : i32
    return %arg1, %c0_i32 : i32, i32
  }
  func.func @transform_4(%arg0: i32, %arg1: i32) -> (i32, i32) {
    %c0_i32 = arith.constant 0 : i32
    %c0_i32_0 = arith.constant 0 : i32
    %c0_i32_1 = arith.constant 0 : i32
    return %c0_i32, %c0_i32_0 : i32, i32
  }
  func.func @transform_5(%arg0: i32, %arg1: i32) -> (i32, i32) {
    %c0_i32 = arith.constant 0 : i32
    %c0_i32_0 = arith.constant 0 : i32
    return %arg0, %c0_i32 : i32, i32
  }
}

</mosaic_0001>

<llo_original>
// kernel: tpu_custom_call.1
$region0: #{tpu_custom_call.1}
  #allocation0 [shape = 'u32[]', space=smem, size = 0x4, offset = 0x4, fixed_abs, tag = 'smem constant byte address 0x4 - core index']
  #allocation1 [shape = 'u32[144,128]{1,0:T(1,128)}', space=vmem, size = 0x12000, scoped, tag = 'internal scratch']
  #allocation2 [shape = 'f32[16,128]{1,0:T(8,128)}', space=vmem, size = 0x2000, scoped, tag = 'scratch operand']
  %s0 = inlined_call_operand.hbm [shape: bf16[16,128], index: 0, kind: input, shape index: {}]
  %s1 = inlined_call_operand.hbm [shape: bf16[128,512], index: 1, kind: input, shape index: {}]
  %s2 = inlined_call_operand.vmem [shape: bf16[1,512], index: 2, kind: input, shape index: {}]
  %s3 = inlined_call_operand.hbm [shape: bf16[256,128], index: 3, kind: input, shape index: {}]
  %s4 = inlined_call_operand.vmem [shape: bf16[1,128], index: 4, kind: input, shape index: {}]
  %s5 = inlined_call_operand.hbm [shape: bf16[16,128], index: 5, kind: output, shape index: {}]
  %s6 = sld [smem:[#allocation0]]
  $region50: #{tpu_custom_call.1} parent=0
    _
  %s8 = ssub.s32 1, %s6
  %s9 = scalar_select 0, %s8, %s6
  $region1: #{tpu_custom_call.1} parent=0
    #allocation3 [shape = 'u8[4096]{0}', space=vmem, size = 0x1000, scoped, tag = 'input window, operand 0, single buffered']
    #allocation4 [shape = 's32[1]{0}', space=sflag, size = 0x4, scoped, tag = 'scoped memory for tpu_custom_call.1']
    #allocation5 [shape = 's32[1]{0}', space=sflag, size = 0x4, scoped, tag = 'scoped memory for tpu_custom_call.1']
    #allocation6 [shape = 'u8[131072]{0}', space=vmem, size = 0x20000, scoped, tag = 'input window, operand 1, single buffered']
    #allocation7 [shape = 's32[1]{0}', space=sflag, size = 0x4, scoped, tag = 'scoped memory for tpu_custom_call.1']
    #allocation8 [shape = 'u8[65536]{0}', space=vmem, size = 0x10000, scoped, tag = 'input window, operand 3, single buffered']
    #allocation9 [shape = 'u8[4096]{0}', space=vmem, size = 0x1000, scoped, tag = 'output window, operand 0, single buffered']
    %10 = vsyncpa [#allocation4], 0
    %11 = vsyncpa [#allocation7], 0
    %12 = vsyncpa [#allocation5], 0
    // Predicated region
    $region2: #{tpu_custom_call.1} parent=1 // pred_check
      _
    $region3: #{tpu_custom_call.1} parent=1 // pred_check_branch
      %14 = sbr.rel (0) target = $region5
    $region4: #{tpu_custom_call.1} parent=1 // pred_region
      %s16 = ssub.s32 128, 128
      %17 = vsyncadd [#allocation4], %s16
      %s18 = sshll.u32 [#allocation3], 4
      %s19 = int_to_ptr.vmem [resolvable:$true] %s18
      %24 = dma.hbm_to_vmem [thread:$0]  %s0, 128, %s19, [#allocation4], 64, 64, 4
    $region5: #{tpu_custom_call.1} parent=1 // pred_fallthru
      _
    // Predicated region
    $region6: #{tpu_custom_call.1} parent=1 // pred_check
      _
    $region7: #{tpu_custom_call.1} parent=1 // pred_check_branch
      %26 = sbr.rel (0) target = $region9
    $region8: #{tpu_custom_call.1} parent=1 // pred_region
      %s28 = ssub.s32 4096, 4096
      %29 = vsyncadd [#allocation7], %s28
      %s30 = sshll.u32 [#allocation6], 4
      %s31 = int_to_ptr.vmem [resolvable:$true] %s30
      %36 = dma.hbm_to_vmem [thread:$0]  %s1, 4096, %s31, [#allocation7], 256, 256, 16
    $region9: #{tpu_custom_call.1} parent=1 // pred_fallthru
      _
    // Predicated region
    $region10: #{tpu_custom_call.1} parent=1 // pred_check
      _
    $region11: #{tpu_custom_call.1} parent=1 // pred_check_branch
      %38 = sbr.rel (0) target = $region13
    $region12: #{tpu_custom_call.1} parent=1 // pred_region
      _
    $region13: #{tpu_custom_call.1} parent=1 // pred_fallthru
      _
    // Predicated region
    $region14: #{tpu_custom_call.1} parent=1 // pred_check
      _
    $region15: #{tpu_custom_call.1} parent=1 // pred_check_branch
      %40 = sbr.rel (0) target = $region17
    $region16: #{tpu_custom_call.1} parent=1 // pred_region
      %s42 = ssub.s32 2048, 2048
      %43 = vsyncadd [#allocation7], %s42
      %s44 = sshll.u32 [#allocation8], 4
      %s45 = int_to_ptr.vmem [resolvable:$true] %s44
      %50 = dma.hbm_to_vmem [thread:$0]  %s3, 2048, %s45, [#allocation7], 64, 64, 4
    $region17: #{tpu_custom_call.1} parent=1 // pred_fallthru
      _
    // Predicated region
    $region18: #{tpu_custom_call.1} parent=1 // pred_check
      _
    $region19: #{tpu_custom_call.1} parent=1 // pred_check_branch
      %52 = sbr.rel (0) target = $region21
    $region20: #{tpu_custom_call.1} parent=1 // pred_region
      _
    $region21: #{tpu_custom_call.1} parent=1 // pred_fallthru
      _
    // Predicated region
    $region22: #{tpu_custom_call.1} parent=1 // pred_check
      _
    $region23: #{tpu_custom_call.1} parent=1 // pred_check_branch
      %54 = sbr.rel (0) target = $region25
    $region24: #{tpu_custom_call.1} parent=1 // pred_region
      %55 = dma.done [#allocation4], 128
    $region25: #{tpu_custom_call.1} parent=1 // pred_fallthru
      _
    // Predicated region
    $region26: #{tpu_custom_call.1} parent=1 // pred_check
      _
    $region27: #{tpu_custom_call.1} parent=1 // pred_check_branch
      %57 = sbr.rel (0) target = $region29
    $region28: #{tpu_custom_call.1} parent=1 // pred_region
      %58 = dma.done [#allocation7], 4096
    $region29: #{tpu_custom_call.1} parent=1 // pred_fallthru
      _
    // Predicated region
    $region30: #{tpu_custom_call.1} parent=1 // pred_check
      _
    $region31: #{tpu_custom_call.1} parent=1 // pred_check_branch
      %60 = sbr.rel (0) target = $region33
    $region32: #{tpu_custom_call.1} parent=1 // pred_region
      %61 = dma.done [#allocation7], 2048
    $region33: #{tpu_custom_call.1} parent=1 // pred_fallthru
      _
    %p63 = scmp.eq.s32.totalorder 0, 0
    // Predicated region
    $region34: #{tpu_custom_call.1} parent=1 // pred_check
      %p64 = pneg %p63
    $region35: #{tpu_custom_call.1} parent=1 // pred_check_branch
      %66 = sbr.rel (%p64) target = $region37
    $region36: #{tpu_custom_call.1} parent=1 // pred_region
      %67 = vst [vmem:[#allocation2] sm:$0xff] 0.0
      %68 = vst [vmem:[#allocation2 + $0x8] sm:$0xff] 0.0
    $region37: #{tpu_custom_call.1} parent=1 // pred_fallthru
      _
    %v69 = vld [vmem:[#allocation3] sm:$0xf]
    %v70 = vld [vmem:[#allocation3 + $0x4] sm:$0xf]
    %v71 = vld [vmem:[#allocation6] sm:$0xff]
    %v72 = vld [vmem:[#allocation6 + $0x8] sm:$0xff]
    %v73 = vld [vmem:[#allocation6 + $0x10] sm:$0xff]
    %v74 = vld [vmem:[#allocation6 + $0x18] sm:$0xff]
    %v75 = vld [vmem:[#allocation6 + $0x20] sm:$0xff]
    %v76 = vld [vmem:[#allocation6 + $0x28] sm:$0xff]
    %v77 = vld [vmem:[#allocation6 + $0x30] sm:$0xff]
    %v78 = vld [vmem:[#allocation6 + $0x38] sm:$0xff]
    %v79 = vld [vmem:[#allocation6 + $0x40] sm:$0xff]
    %v80 = vld [vmem:[#allocation6 + $0x48] sm:$0xff]
    %v81 = vld [vmem:[#allocation6 + $0x50] sm:$0xff]
    %v82 = vld [vmem:[#allocation6 + $0x58] sm:$0xff]
    %v83 = vld [vmem:[#allocation6 + $0x60] sm:$0xff]
    %v84 = vld [vmem:[#allocation6 + $0x68] sm:$0xff]
    %v85 = vld [vmem:[#allocation6 + $0x70] sm:$0xff]
    %v86 = vld [vmem:[#allocation6 + $0x78] sm:$0xff]
    %v87 = vld [vmem:[#allocation6 + $0x80] sm:$0xff]
    %v88 = vld [vmem:[#allocation6 + $0x88] sm:$0xff]
    %v89 = vld [vmem:[#allocation6 + $0x90] sm:$0xff]
    %v90 = vld [vmem:[#allocation6 + $0x98] sm:$0xff]
    %v91 = vld [vmem:[#allocation6 + $0xa0] sm:$0xff]
    %v92 = vld [vmem:[#allocation6 + $0xa8] sm:$0xff]
    %v93 = vld [vmem:[#allocation6 + $0xb0] sm:$0xff]
    %v94 = vld [vmem:[#allocation6 + $0xb8] sm:$0xff]
    %v95 = vld [vmem:[#allocation6 + $0xc0] sm:$0xff]
    %v96 = vld [vmem:[#allocation6 + $0xc8] sm:$0xff]
    %v97 = vld [vmem:[#allocation6 + $0xd0] sm:$0xff]
    %v98 = vld [vmem:[#allocation6 + $0xd8] sm:$0xff]
    %v99 = vld [vmem:[#allocation6 + $0xe0] sm:$0xff]
    %v100 = vld [vmem:[#allocation6 + $0xe8] sm:$0xff]
    %v101 = vld [vmem:[#allocation6 + $0xf0] sm:$0xff]
    %v102 = vld [vmem:[#allocation6 + $0xf8] sm:$0xff]
    %v103 = vld [vmem:[%s2] sm:$0xf]
    %v104 = vunpack.c.l.bf16 %v103
    %v106 = vlaneseq
    %v107 = vshrl.u32 %v106, 7
    %v108 = vsub.s32 0, %v107
    %v109 = vrot.slane %v104, %v108
    %v110 = vlaneseq
    %v111 = vshrl.u32 %v110, 7
    %v112 = vsub.s32 2, %v111
    %v113 = vrot.slane %v104, %v112
    %v114 = vlaneseq
    %v115 = vshrl.u32 %v114, 7
    %v116 = vsub.s32 4, %v115
    %v117 = vrot.slane %v104, %v116
    %v118 = vlaneseq
    %v119 = vshrl.u32 %v118, 7
    %v120 = vsub.s32 6, %v119
    %v121 = vrot.slane %v104, %v120
    %v126 = vlaneseq
    %v127 = vshrl.u32 %v126, 7
    %v128 = vsub.s32 0, %v127
    %v129 = vrot.slane %v109, %v128
    %v130 = vlaneseq
    %v131 = vshrl.u32 %v130, 7
    %v132 = vsub.s32 0, %v131
    %v133 = vrot.slane %v113, %v132
    %v134 = vlaneseq
    %v135 = vshrl.u32 %v134, 7
    %v136 = vsub.s32 0, %v135
    %v137 = vrot.slane %v117, %v136
    %v138 = vlaneseq
    %v139 = vshrl.u32 %v138, 7
    %v140 = vsub.s32 0, %v139
    %v141 = vrot.slane %v121, %v140
    %v144 = vunpack.c.l.b16 %v69
    %v145 = vunpack.c.l.b16 %v70
    %v146 = vpack.c.b16 %v145, %v144
    %v180 = vunpack.c.l.b16 %v71
    %v181 = vunpack.c.h.b16 %v71
    %v182 = vunpack.c.l.b16 %v72
    %v183 = vunpack.c.h.b16 %v72
    %v184 = vunpack.c.l.b16 %v73
    %v185 = vunpack.c.h.b16 %v73
    %v186 = vunpack.c.l.b16 %v74
    %v187 = vunpack.c.h.b16 %v74
    %v188 = vunpack.c.l.b16 %v75
    %v189 = vunpack.c.h.b16 %v75
    %v190 = vunpack.c.l.b16 %v76
    %v191 = vunpack.c.h.b16 %v76
    %v192 = vunpack.c.l.b16 %v77
    %v193 = vunpack.c.h.b16 %v77
    %v194 = vunpack.c.l.b16 %v78
    %v195 = vunpack.c.h.b16 %v78
    %v196 = vunpack.c.l.b16 %v79
    %v197 = vunpack.c.h.b16 %v79
    %v198 = vunpack.c.l.b16 %v80
    %v199 = vunpack.c.h.b16 %v80
    %v200 = vunpack.c.l.b16 %v81
    %v201 = vunpack.c.h.b16 %v81
    %v202 = vunpack.c.l.b16 %v82
    %v203 = vunpack.c.h.b16 %v82
    %v204 = vunpack.c.l.b16 %v83
    %v205 = vunpack.c.h.b16 %v83
    %v206 = vunpack.c.l.b16 %v84
    %v207 = vunpack.c.h.b16 %v84
    %v208 = vunpack.c.l.b16 %v85
    %v209 = vunpack.c.h.b16 %v85
    %v210 = vunpack.c.l.b16 %v86
    %v211 = vunpack.c.h.b16 %v86
    %v212 = vunpack.c.l.b16 %v87
    %v213 = vunpack.c.h.b16 %v87
    %v214 = vunpack.c.l.b16 %v88
    %v215 = vunpack.c.h.b16 %v88
    %v216 = vunpack.c.l.b16 %v89
    %v217 = vunpack.c.h.b16 %v89
    %v218 = vunpack.c.l.b16 %v90
    %v219 = vunpack.c.h.b16 %v90
    %v220 = vunpack.c.l.b16 %v91
    %v221 = vunpack.c.h.b16 %v91
    %v222 = vunpack.c.l.b16 %v92
    %v223 = vunpack.c.h.b16 %v92
    %v224 = vunpack.c.l.b16 %v93
    %v225 = vunpack.c.h.b16 %v93
    %v226 = vunpack.c.l.b16 %v94
    %v227 = vunpack.c.h.b16 %v94
    %v228 = vunpack.c.l.b16 %v95
    %v229 = vunpack.c.h.b16 %v95
    %v230 = vunpack.c.l.b16 %v96
    %v231 = vunpack.c.h.b16 %v96
    %v232 = vunpack.c.l.b16 %v97
    %v233 = vunpack.c.h.b16 %v97
    %v234 = vunpack.c.l.b16 %v98
    %v235 = vunpack.c.h.b16 %v98
    %v236 = vunpack.c.l.b16 %v99
    %v237 = vunpack.c.h.b16 %v99
    %v238 = vunpack.c.l.b16 %v100
    %v239 = vunpack.c.h.b16 %v100
    %v240 = vunpack.c.l.b16 %v101
    %v241 = vunpack.c.h.b16 %v101
    %v242 = vunpack.c.l.b16 %v102
    %v243 = vunpack.c.h.b16 %v102
    %v244 = vpack.c.b16 %v184, %v180
    %v245 = vpack.c.b16 %v185, %v181
    %v246 = vpack.c.b16 %v186, %v182
    %v247 = vpack.c.b16 %v187, %v183
    %v248 = vpack.c.b16 %v192, %v188
    %v249 = vpack.c.b16 %v193, %v189
    %v250 = vpack.c.b16 %v194, %v190
    %v251 = vpack.c.b16 %v195, %v191
    %v252 = vpack.c.b16 %v200, %v196
    %v253 = vpack.c.b16 %v201, %v197
    %v254 = vpack.c.b16 %v202, %v198
    %v255 = vpack.c.b16 %v203, %v199
    %v256 = vpack.c.b16 %v208, %v204
    %v257 = vpack.c.b16 %v209, %v205
    %v258 = vpack.c.b16 %v210, %v206
    %v259 = vpack.c.b16 %v211, %v207
    %v260 = vpack.c.b16 %v216, %v212
    %v261 = vpack.c.b16 %v217, %v213
    %v262 = vpack.c.b16 %v218, %v214
    %v263 = vpack.c.b16 %v219, %v215
    %v264 = vpack.c.b16 %v224, %v220
    %v265 = vpack.c.b16 %v225, %v221
    %v266 = vpack.c.b16 %v226, %v222
    %v267 = vpack.c.b16 %v227, %v223
    %v268 = vpack.c.b16 %v232, %v228
    %v269 = vpack.c.b16 %v233, %v229
    %v270 = vpack.c.b16 %v234, %v230
    %v271 = vpack.c.b16 %v235, %v231
    %v272 = vpack.c.b16 %v240, %v236
    %v273 = vpack.c.b16 %v241, %v237
    %v274 = vpack.c.b16 %v242, %v238
    %v275 = vpack.c.b16 %v243, %v239
    %308 = vmatprep.subr.bf16.mxu0 %v245
    %309 = vmatpush1.bf16.msra.mxu0 %v244
    %310 = vmatprep.subr.bf16.mxu0 %v249
    %311 = vmatpush1.bf16.msra.mxu0 %v248
    %312 = vmatprep.subr.bf16.mxu0 %v253
    %313 = vmatpush1.bf16.msra.mxu0 %v252
    %314 = vmatprep.subr.bf16.mxu0 %v257
    %315 = vmatpush1.bf16.msra.mxu0 %v256
    %316 = vmatprep.subr.bf16.mxu0 %v261
    %317 = vmatpush1.bf16.msra.mxu0 %v260
    %318 = vmatprep.subr.bf16.mxu0 %v265
    %319 = vmatpush1.bf16.msra.mxu0 %v264
    %320 = vmatprep.subr.bf16.mxu0 %v269
    %321 = vmatpush1.bf16.msra.mxu0 %v268
    %322 = vmatprep.subr.bf16.mxu0 %v273
    %323 = vmatpush1.bf16.msra.mxu0 %v272
    %324 = vmatprep.subr.bf16.mxu0 0
    %325 = vmatpush1.bf16.msra.mxu0 0
    %326 = vmatprep.subr.bf16.mxu0 0
    %327 = vmatpush1.bf16.msra.mxu0 0
    %328 = vmatprep.subr.bf16.mxu0 0
    %329 = vmatpush1.bf16.msra.mxu0 0
    %330 = vmatprep.subr.bf16.mxu0 0
    %331 = vmatpush1.bf16.msra.mxu0 0
    %332 = vmatprep.subr.bf16.mxu0 0
    %333 = vmatpush1.bf16.msra.mxu0 0
    %334 = vmatprep.subr.bf16.mxu0 0
    %335 = vmatpush1.bf16.msra.mxu0 0
    %336 = vmatprep.subr.bf16.mxu0 0
    %337 = vmatpush1.bf16.msra.mxu0 0
    %338 = vmatprep.subr.bf16.mxu0 0
    %339 = vmatpush1.bf16.msra.mxu0 0
    %340 = vmatprep.mubr.bf16.mxu0 0
    %341 = vmatmul.mubr.bf16.gmra.mrb[0].mxu0 %v146
    %v342 = vpop.f32.mrb[0].mxu0
    %v343 = vadd.f32 %v129, %v342
    %v344 = vpop.f32.mrb[0].mxu0
    %v345 = vadd.f32 %v133, %v344
    %v346 = vpop.f32.mrb[0].mxu0
    %v347 = vadd.f32 %v129, %v346
    %v348 = vpop.f32.mrb[0].mxu0
    %v349 = vadd.f32 %v133, %v348
    %350 = vdwg.mxu0
    %351 = vmatprep.subr.bf16.mxu0 %v247
    %352 = vmatpush1.bf16.msra.mxu0 %v246
    %353 = vmatprep.subr.bf16.mxu0 %v251
    %354 = vmatpush1.bf16.msra.mxu0 %v250
    %355 = vmatprep.subr.bf16.mxu0 %v255
    %356 = vmatpush1.bf16.msra.mxu0 %v254
    %357 = vmatprep.subr.bf16.mxu0 %v259
    %358 = vmatpush1.bf16.msra.mxu0 %v258
    %359 = vmatprep.subr.bf16.mxu0 %v263
    %360 = vmatpush1.bf16.msra.mxu0 %v262
    %361 = vmatprep.subr.bf16.mxu0 %v267
    %362 = vmatpush1.bf16.msra.mxu0 %v266
    %363 = vmatprep.subr.bf16.mxu0 %v271
    %364 = vmatpush1.bf16.msra.mxu0 %v270
    %365 = vmatprep.subr.bf16.mxu0 %v275
    %366 = vmatpush1.bf16.msra.mxu0 %v274
    %367 = vmatprep.subr.bf16.mxu0 0
    %368 = vmatpush1.bf16.msra.mxu0 0
    %369 = vmatprep.subr.bf16.mxu0 0
    %370 = vmatpush1.bf16.msra.mxu0 0
    %371 = vmatprep.subr.bf16.mxu0 0
    %372 = vmatpush1.bf16.msra.mxu0 0
    %373 = vmatprep.subr.bf16.mxu0 0
    %374 = vmatpush1.bf16.msra.mxu0 0
    %375 = vmatprep.subr.bf16.mxu0 0
    %376 = vmatpush1.bf16.msra.mxu0 0
    %377 = vmatprep.subr.bf16.mxu0 0
    %378 = vmatpush1.bf16.msra.mxu0 0
    %379 = vmatprep.subr.bf16.mxu0 0
    %380 = vmatpush1.bf16.msra.mxu0 0
    %381 = vmatprep.subr.bf16.mxu0 0
    %382 = vmatpush1.bf16.msra.mxu0 0
    %383 = vmatprep.mubr.bf16.mxu0 0
    %384 = vmatmul.mubr.bf16.gmra.mrb[0].mxu0 %v146
    %v385 = vpop.f32.mrb[0].mxu0
    %v386 = vadd.f32 %v137, %v385
    %v387 = vpop.f32.mrb[0].mxu0
    %v388 = vadd.f32 %v141, %v387
    %v389 = vpop.f32.mrb[0].mxu0
    %v390 = vadd.f32 %v137, %v389
    %v391 = vpop.f32.mrb[0].mxu0
    %v392 = vadd.f32 %v141, %v391
    %393 = vdwg.mxu0
    %v394 = vxor.u32 %v343, 2147483648
    %v395 = vxor.u32 %v345, 2147483648
    %v396 = vxor.u32 %v347, 2147483648
    %v397 = vxor.u32 %v349, 2147483648
    %v398 = vmul.f32 %v394, 1.442695
    %v399 = vpow.pop %v398
    %v400 = vmul.f32 %v395, 1.442695
    %v401 = vpow.pop %v400
    %v402 = vmul.f32 %v396, 1.442695
    %v403 = vpow.pop %v402
    %v404 = vmul.f32 %v397, 1.442695
    %v405 = vpow.pop %v404
    %v406 = vadd.f32 %v399, 1.0
    %v407 = vadd.f32 %v401, 1.0
    %v408 = vadd.f32 %v403, 1.0
    %v409 = vadd.f32 %v405, 1.0
    %v410 = vrcp.pop %v406
    %v411 = vmul.f32 1.0, %v410
    %v412 = vrcp.pop %v407
    %v413 = vmul.f32 1.0, %v412
    %v414 = vrcp.pop %v408
    %v415 = vmul.f32 1.0, %v414
    %v416 = vrcp.pop %v409
    %v417 = vmul.f32 1.0, %v416
    %v418 = vmul.f32 %v343, %v411
    %v419 = vmul.f32 %v345, %v413
    %v420 = vmul.f32 %v347, %v415
    %v421 = vmul.f32 %v349, %v417
    %v422 = vmul.f32 %v418, %v386
    %v423 = vmul.f32 %v419, %v388
    %v424 = vmul.f32 %v420, %v390
    %v425 = vmul.f32 %v421, %v392
    %v426 = vld [vmem:[#allocation2] sm:$0xff]
    %v427 = vld [vmem:[#allocation2 + $0x8] sm:$0xff]
    %v428 = vpack.c.bf16 %v424, %v422
    %v429 = vpack.c.bf16 %v425, %v423
    %v430 = vld [vmem:[#allocation8] sm:$0xf]
    %v431 = vld [vmem:[#allocation8 + $0x4] sm:$0xf]
    %v432 = vld [vmem:[#allocation8 + $0x8] sm:$0xf]
    %v433 = vld [vmem:[#allocation8 + $0xc] sm:$0xf]
    %v434 = vld [vmem:[#allocation8 + $0x10] sm:$0xf]
    %v435 = vld [vmem:[#allocation8 + $0x14] sm:$0xf]
    %v436 = vld [vmem:[#allocation8 + $0x18] sm:$0xf]
    %v437 = vld [vmem:[#allocation8 + $0x1c] sm:$0xf]
    %v438 = vld [vmem:[#allocation8 + $0x20] sm:$0xf]
    %v439 = vld [vmem:[#allocation8 + $0x24] sm:$0xf]
    %v440 = vld [vmem:[#allocation8 + $0x28] sm:$0xf]
    %v441 = vld [vmem:[#allocation8 + $0x2c] sm:$0xf]
    %v442 = vld [vmem:[#allocation8 + $0x30] sm:$0xf]
    %v443 = vld [vmem:[#allocation8 + $0x34] sm:$0xf]
    %v444 = vld [vmem:[#allocation8 + $0x38] sm:$0xf]
    %v445 = vld [vmem:[#allocation8 + $0x3c] sm:$0xf]
    %v446 = vld [vmem:[#allocation8 + $0x40] sm:$0xf]
    %v447 = vld [vmem:[#allocation8 + $0x44] sm:$0xf]
    %v448 = vld [vmem:[#allocation8 + $0x48] sm:$0xf]
    %v449 = vld [vmem:[#allocation8 + $0x4c] sm:$0xf]
    %v450 = vld [vmem:[#allocation8 + $0x50] sm:$0xf]
    %v451 = vld [vmem:[#allocation8 + $0x54] sm:$0xf]
    %v452 = vld [vmem:[#allocation8 + $0x58] sm:$0xf]
    %v453 = vld [vmem:[#allocation8 + $0x5c] sm:$0xf]
    %v454 = vld [vmem:[#allocation8 + $0x60] sm:$0xf]
    %v455 = vld [vmem:[#allocation8 + $0x64] sm:$0xf]
    %v456 = vld [vmem:[#allocation8 + $0x68] sm:$0xf]
    %v457 = vld [vmem:[#allocation8 + $0x6c] sm:$0xf]
    %v458 = vld [vmem:[#allocation8 + $0x70] sm:$0xf]
    %v459 = vld [vmem:[#allocation8 + $0x74] sm:$0xf]
    %v460 = vld [vmem:[#allocation8 + $0x78] sm:$0xf]
    %v461 = vld [vmem:[#allocation8 + $0x7c] sm:$0xf]
    %v494 = vunpack.c.l.b16 %v430
    %v495 = vunpack.c.l.b16 %v431
    %v496 = vunpack.c.l.b16 %v432
    %v497 = vunpack.c.l.b16 %v433
    %v498 = vunpack.c.l.b16 %v434
    %v499 = vunpack.c.l.b16 %v435
    %v500 = vunpack.c.l.b16 %v436
    %v501 = vunpack.c.l.b16 %v437
    %v502 = vunpack.c.l.b16 %v438
    %v503 = vunpack.c.l.b16 %v439
    %v504 = vunpack.c.l.b16 %v440
    %v505 = vunpack.c.l.b16 %v441
    %v506 = vunpack.c.l.b16 %v442
    %v507 = vunpack.c.l.b16 %v443
    %v508 = vunpack.c.l.b16 %v444
    %v509 = vunpack.c.l.b16 %v445
    %v510 = vunpack.c.l.b16 %v446
    %v511 = vunpack.c.l.b16 %v447
    %v512 = vunpack.c.l.b16 %v448
    %v513 = vunpack.c.l.b16 %v449
    %v514 = vunpack.c.l.b16 %v450
    %v515 = vunpack.c.l.b16 %v451
    %v516 = vunpack.c.l.b16 %v452
    %v517 = vunpack.c.l.b16 %v453
    %v518 = vunpack.c.l.b16 %v454
    %v519 = vunpack.c.l.b16 %v455
    %v520 = vunpack.c.l.b16 %v456
    %v521 = vunpack.c.l.b16 %v457
    %v522 = vunpack.c.l.b16 %v458
    %v523 = vunpack.c.l.b16 %v459
    %v524 = vunpack.c.l.b16 %v460
    %v525 = vunpack.c.l.b16 %v461
    %v526 = vpack.c.b16 %v495, %v494
    %v527 = vpack.c.b16 %v497, %v496
    %v528 = vpack.c.b16 %v499, %v498
    %v529 = vpack.c.b16 %v501, %v500
    %v530 = vpack.c.b16 %v503, %v502
    %v531 = vpack.c.b16 %v505, %v504
    %v532 = vpack.c.b16 %v507, %v506
    %v533 = vpack.c.b16 %v509, %v508
    %v534 = vpack.c.b16 %v511, %v510
    %v535 = vpack.c.b16 %v513, %v512
    %v536 = vpack.c.b16 %v515, %v514
    %v537 = vpack.c.b16 %v517, %v516
    %v538 = vpack.c.b16 %v519, %v518
    %v539 = vpack.c.b16 %v521, %v520
    %v540 = vpack.c.b16 %v523, %v522
    %v541 = vpack.c.b16 %v525, %v524
    %558 = vmatprep.subr.bf16.mxu0 0
    %559 = vmatpush1.bf16.msra.mxu0 %v526
    %560 = vmatprep.subr.bf16.mxu0 0
    %561 = vmatpush1.bf16.msra.mxu0 %v527
    %562 = vmatprep.subr.bf16.mxu0 0
    %563 = vmatpush1.bf16.msra.mxu0 %v528
    %564 = vmatprep.subr.bf16.mxu0 0
    %565 = vmatpush1.bf16.msra.mxu0 %v529
    %566 = vmatprep.subr.bf16.mxu0 0
    %567 = vmatpush1.bf16.msra.mxu0 %v530
    %568 = vmatprep.subr.bf16.mxu0 0
    %569 = vmatpush1.bf16.msra.mxu0 %v531
    %570 = vmatprep.subr.bf16.mxu0 0
    %571 = vmatpush1.bf16.msra.mxu0 %v532
    %572 = vmatprep.subr.bf16.mxu0 0
    %573 = vmatpush1.bf16.msra.mxu0 %v533
    %574 = vmatprep.subr.bf16.mxu0 0
    %575 = vmatpush1.bf16.msra.mxu0 %v534
    %576 = vmatprep.subr.bf16.mxu0 0
    %577 = vmatpush1.bf16.msra.mxu0 %v535
    %578 = vmatprep.subr.bf16.mxu0 0
    %579 = vmatpush1.bf16.msra.mxu0 %v536
    %580 = vmatprep.subr.bf16.mxu0 0
    %581 = vmatpush1.bf16.msra.mxu0 %v537
    %582 = vmatprep.subr.bf16.mxu0 0
    %583 = vmatpush1.bf16.msra.mxu0 %v538
    %584 = vmatprep.subr.bf16.mxu0 0
    %585 = vmatpush1.bf16.msra.mxu0 %v539
    %586 = vmatprep.subr.bf16.mxu0 0
    %587 = vmatpush1.bf16.msra.mxu0 %v540
    %588 = vmatprep.subr.bf16.mxu0 0
    %589 = vmatpush1.bf16.msra.mxu0 %v541
    %590 = vmatprep.mubr.bf16.mxu0 %v429
    %591 = vmatmul.mubr.bf16.gmra.mrb[0].mxu0 %v428
    %v592 = vpop.f32.mrb[0].mxu0
    %v593 = vadd.f32 0.0, %v592
    %v594 = vpop.f32.mrb[0].mxu0
    %v595 = vpop.f32.mrb[0].mxu0
    %v596 = vadd.f32 0.0, %v595
    %v597 = vpop.f32.mrb[0].mxu0
    %598 = vdwg.mxu0
    %v599 = vadd.f32 %v426, %v593
    %v600 = vadd.f32 %v427, %v596
    %601 = vst [vmem:[#allocation2] sm:$0xff] %v599
    %602 = vst [vmem:[#allocation2 + $0x8] sm:$0xff] %v600
    // Predicated region
    $region38: #{tpu_custom_call.1} parent=1 // pred_check
      %p603 = pneg %p63
    $region39: #{tpu_custom_call.1} parent=1 // pred_check_branch
      %605 = sbr.rel (%p603) target = $region41
    $region40: #{tpu_custom_call.1} parent=1 // pred_region
      %v606 = vld [vmem:[#allocation2] sm:$0xff]
      %v607 = vld [vmem:[#allocation2 + $0x8] sm:$0xff]
      %v608 = vld [vmem:[%s4] sm:$0x1]
      %v609 = vunpack.c.l.bf16 %v608
      %v610 = vlaneseq
      %v611 = vshrl.u32 %v610, 7
      %v612 = vsub.s32 0, %v611
      %v613 = vrot.slane %v609, %v612
      %v614 = vadd.f32 %v606, %v613
      %v615 = vadd.f32 %v607, %v613
      %v616 = vpack.c.bf16 %v615, %v614
      %v618 = vunpack.c.l.b16 %v616
      %v619 = vunpack.c.h.b16 %v616
      %v620 = vpack.c.b16 %v618, %v618
      %v621 = vpack.c.b16 %v619, %v619
      %624 = vst [vmem:[#allocation9] sm:$0xf] %v620
      %625 = vst [vmem:[#allocation9 + $0x4] sm:$0xf] %v621
    $region41: #{tpu_custom_call.1} parent=1 // pred_fallthru
      _
    // Predicated region
    $region42: #{tpu_custom_call.1} parent=1 // pred_check
      _
    $region43: #{tpu_custom_call.1} parent=1 // pred_check_branch
      %627 = sbr.rel (0) target = $region45
    $region44: #{tpu_custom_call.1} parent=1 // pred_region
      %s629 = ssub.s32 128, 128
      %630 = vsyncadd [#allocation5], %s629
      %s631 = sshll.u32 [#allocation9], 4
      %s632 = int_to_ptr.vmem [resolvable:$true] %s631
      %637 = dma.vmem_to_hbm [thread:$0]  %s632, 128, %s5, [#allocation5], 64, 64, 4
    $region45: #{tpu_custom_call.1} parent=1 // pred_fallthru
      _
    // Predicated region
    $region46: #{tpu_custom_call.1} parent=1 // pred_check
      _
    $region47: #{tpu_custom_call.1} parent=1 // pred_check_branch
      %639 = sbr.rel (0) target = $region49
    $region48: #{tpu_custom_call.1} parent=1 // pred_region
      %640 = dma.done [#allocation5], 128
    $region49: #{tpu_custom_call.1} parent=1 // pred_fallthru
      _
    %641 = vsyncpa [#allocation4], 1
    %642 = vsyncpa [#allocation7], 1
    %643 = vsyncpa [#allocation5], 1

</llo_original>
